<compile_context>
chip_gen: v7x
topology: tpu7x:2x2x1
jax: 0.10.0
libtpu: 0.0.40
codegen_flags: <defaults>
</compile_context>

<pallas_src>
import jax
import jax.numpy as jnp
from jax.experimental import pallas as pl
from jax.experimental.pallas import tpu as pltpu

LANE = 128          # TPU lane width: HBM-facing feature dims are padded to this
_MAX_TILE_B = 1024  # batch-tile upper bound (sweepable 512..2048)


def _round_up(x, m):
    return (x + m - 1) // m * m


def _mlp_kernel(x_ref, w_in_ref, w_hid_ref, w_out_ref, bias_ref, o_ref):
    """Fused 6-layer MLP.  All matmuls feed the MXU with bf16 operands and
    f32 accumulation; bias-add + ReLU are fused into one f32 VPU pass."""
    H = w_in_ref.shape[1]

    x = x_ref[...]                      # (TILE_B, 128) bf16, lane-dense
    b = bias_ref[...]                   # (6, 128) f32 bias slab

    # inp (no ReLU)
    h = jnp.dot(x, w_in_ref[...], preferred_element_type=jnp.float32) + b[0:1, :H]
    # hidden1..3 (+ ReLU fused with the bias add)
    h = jnp.maximum(jnp.dot(h.astype(jnp.bfloat16), w_hid_ref[0],
                            preferred_element_type=jnp.float32) + b[1:2, :H], 0.0)
    h = jnp.maximum(jnp.dot(h.astype(jnp.bfloat16), w_hid_ref[1],
                            preferred_element_type=jnp.float32) + b[2:3, :H], 0.0)
    h = jnp.maximum(jnp.dot(h.astype(jnp.bfloat16), w_hid_ref[2],
                            preferred_element_type=jnp.float32) + b[3:4, :H], 0.0)
    # hidden4 (no ReLU)
    h = jnp.dot(h.astype(jnp.bfloat16), w_hid_ref[3],
                preferred_element_type=jnp.float32) + b[4:5, :H]
    # out (lane-dense padded to 128; pad columns are exactly zero)
    y = jnp.dot(h.astype(jnp.bfloat16), w_out_ref[...],
                preferred_element_type=jnp.float32) + b[5:6, :]
    o_ref[...] = y.astype(o_ref.dtype)


def pack_params(params):
    """params: list of 6 (W, b) with W (in, out) f32 and b (1, out) f32.

    Returns consolidated, lane-padded, bf16-cast kernel operands.  Zero
    padding is exact through the network (padded inputs/columns stay 0)."""
    (w_in, b_in), (w1, b1), (w2, b2), (w3, b3), (w4, b4), (w_out, b_out) = params
    n_in, H = w_in.shape
    n_out = w_out.shape[1]

    w_in_p = jnp.zeros((LANE, H), jnp.float32).at[:n_in, :].set(w_in)
    w_hid = jnp.stack([w1, w2, w3, w4], axis=0)                   # (4, H, H)
    w_out_p = jnp.zeros((H, LANE), jnp.float32).at[:, :n_out].set(w_out)

    bias = jnp.zeros((6, LANE), jnp.float32)
    bias = bias.at[0, :H].set(b_in[0])
    bias = bias.at[1, :H].set(b1[0])
    bias = bias.at[2, :H].set(b2[0])
    bias = bias.at[3, :H].set(b3[0])
    bias = bias.at[4, :H].set(b4[0])
    bias = bias.at[5, :n_out].set(b_out[0])

    return dict(
        w_in=w_in_p.astype(jnp.bfloat16),
        w_hid=w_hid.astype(jnp.bfloat16),
        w_out=w_out_p.astype(jnp.bfloat16),
        bias=bias,                      # kept f32: bias add / ReLU stay f32 on the VPU
        n_in=n_in, n_hidden=H, n_out=n_out,
    )


def net_forward(x, packed):
    """x: (B, N_input) f32.  packed: output of pack_params()."""
    B, n_in = x.shape
    H = packed["n_hidden"]
    n_out = packed["n_out"]
    assert n_in == packed["n_in"]

    tile_b = min(_MAX_TILE_B, _round_up(B, 8))
    b_pad = _round_up(B, tile_b)

    # Lane-dense, batch-padded, bf16 input for the MXU.
    x_p = jnp.zeros((b_pad, LANE), jnp.bfloat16).at[:B, :n_in].set(
        x.astype(jnp.bfloat16))

    grid = (b_pad // tile_b,)

    flops = 2 * b_pad * (LANE * H + 4 * H * H + H * LANE)
    bytes_accessed = (x_p.size * 2 + b_pad * LANE * 4
                      + packed["w_in"].size * 2 + packed["w_hid"].size * 2
                      + packed["w_out"].size * 2 + packed["bias"].size * 4)

    out = pl.pallas_call(
        _mlp_kernel,
        out_shape=jax.ShapeDtypeStruct((b_pad, LANE), jnp.float32),
        grid=grid,
        in_specs=[
            pl.BlockSpec((tile_b, LANE), lambda i: (i, 0)),   # x: tiled over batch
            pl.BlockSpec((LANE, H), lambda i: (0, 0)),        # w_in: VMEM-resident
            pl.BlockSpec((4, H, H), lambda i: (0, 0, 0)),     # hidden weights: resident
            pl.BlockSpec((H, LANE), lambda i: (0, 0)),        # w_out: resident
            pl.BlockSpec((6, LANE), lambda i: (0, 0)),        # bias slab: resident
        ],
        out_specs=pl.BlockSpec((tile_b, LANE), lambda i: (i, 0)),
        compiler_params=pltpu.CompilerParams(
            dimension_semantics=("parallel",)),               # megacore-shard batch (v7x)
        cost_estimate=pl.CostEstimate(
            flops=flops, transcendentals=0, bytes_accessed=bytes_accessed),
    )(x_p, packed["w_in"], packed["w_hid"], packed["w_out"], packed["bias"])

    return out[:B, :n_out]


def init_params(key, n_input, n_hidden, n_output):
    """Deterministic synthetic parameters (PyTorch-Linear-style uniform init)."""
    dims = [(n_input, n_hidden),
            (n_hidden, n_hidden),
            (n_hidden, n_hidden),
            (n_hidden, n_hidden),
            (n_hidden, n_hidden),
            (n_hidden, n_output)]
    params = []
    for (fan_in, fan_out) in dims:
        key, kw, kb = jax.random.split(key, 3)
        bound = 1.0 / jnp.sqrt(float(fan_in))
        w = jax.random.uniform(kw, (fan_in, fan_out), jnp.float32, -bound, bound)
        b = jax.random.uniform(kb, (1, fan_out), jnp.float32, -bound, bound)
        params.append((w, b))
    return params


def net_forward_ref(x, params, matmul_dtype=jnp.float32):
    """Pure-JAX reference.  matmul_dtype=bf16 reproduces the kernel's numerics
    (bf16 MXU operands, f32 accumulation); f32 reproduces the PyTorch module."""
    def lin(h, w, b):
        return jnp.dot(h.astype(matmul_dtype), w.astype(matmul_dtype),
                       preferred_element_type=jnp.float32) + b
    h = lin(x, *params[0])                      # inp      (no relu)
    h = jnp.maximum(lin(h, *params[1]), 0.0)    # hidden1 + relu
    h = jnp.maximum(lin(h, *params[2]), 0.0)    # hidden2 + relu
    h = jnp.maximum(lin(h, *params[3]), 0.0)    # hidden3 + relu
    h = lin(h, *params[4])                      # hidden4  (no relu)
    h = lin(h, *params[5])                      # out
    return h


if __name__ == "__main__":
    # Small shapes consistent with the module: Net(N_input, N_hidden, N_output)
    N_INPUT, N_HIDDEN, N_OUTPUT = 8, 32, 4
    BATCH = 8

    key = jax.random.PRNGKey(0)
    key, kx = jax.random.split(key)
    x = jax.random.normal(kx, (BATCH, N_INPUT), jnp.float32)

    params = init_params(key, N_INPUT, N_HIDDEN, N_OUTPUT)
    packed = pack_params(params)

    y = jax.block_until_ready(net_forward(x, packed))
    assert y.shape == (BATCH, N_OUTPUT)

    # Numerics-matched reference (same bf16-operand / f32-accumulate strategy).
    y_match = net_forward_ref(x, params, matmul_dtype=jnp.bfloat16)
    assert jnp.allclose(y, y_match, atol=1e-3, rtol=1e-3)

    # Loose sanity check against the full-f32 PyTorch-equivalent forward.
    y_f32 = net_forward_ref(x, params, matmul_dtype=jnp.float32)
    assert jnp.allclose(y, y_f32, atol=1e-1, rtol=1e-1)

    print("KERNEL_OK")
</pallas_src>

<mosaic_0001>
module attributes {stable_mosaic.version = 11 : i64} {
  func.func @_mlp_kernel(%arg0: i32, %arg1: memref<8x128xbf16, #tpu.memory_space<vmem>>, %arg2: memref<128x32xbf16, #tpu.memory_space<vmem>>, %arg3: memref<4x32x32xbf16, #tpu.memory_space<vmem>>, %arg4: memref<32x128xbf16, #tpu.memory_space<vmem>>, %arg5: memref<6x128xf32, #tpu.memory_space<vmem>>, %arg6: memref<8x128xf32, #tpu.memory_space<vmem>>) attributes {dimension_semantics = [#tpu.dimension_semantics<parallel>], iteration_bounds = array<i64: 1>, scalar_prefetch = 0 : i64, scratch_operands = 0 : i64, tpu.core_type = #tpu.core_type<tc>, window_params = [{transform_indices = @transform_0, window_bounds = array<i64: 8, 128>}, {pipeline_mode = #tpu.pipeline_mode<synchronous>, transform_indices = @transform_1, window_bounds = array<i64: 128, 32>}, {pipeline_mode = #tpu.pipeline_mode<synchronous>, transform_indices = @transform_2, window_bounds = array<i64: 4, 32, 32>}, {pipeline_mode = #tpu.pipeline_mode<synchronous>, transform_indices = @transform_3, window_bounds = array<i64: 32, 128>}, {pipeline_mode = #tpu.pipeline_mode<synchronous>, transform_indices = @transform_4, window_bounds = array<i64: 6, 128>}, {transform_indices = @transform_5, window_bounds = array<i64: 8, 128>}]} {
    %c0 = arith.constant 0 : index
    %c0_0 = arith.constant 0 : index
    %0 = vector.load %arg1[%c0, %c0_0] : memref<8x128xbf16, #tpu.memory_space<vmem>>, vector<8x128xbf16>
    %c0_1 = arith.constant 0 : index
    %c0_2 = arith.constant 0 : index
    %1 = vector.load %arg5[%c0_1, %c0_2] : memref<6x128xf32, #tpu.memory_space<vmem>>, vector<6x128xf32>
    %c0_3 = arith.constant 0 : index
    %c0_4 = arith.constant 0 : index
    %2 = vector.load %arg2[%c0_3, %c0_4] : memref<128x32xbf16, #tpu.memory_space<vmem>>, vector<128x32xbf16>
    %cst = arith.constant dense<0.000000e+00> : vector<8x32xf32>
    %3 = tpu.matmul %0, %2, %cst {dimension_numbers = #tpu.dot_dimension_numbers<[1], [0], [0], [1], [0, 0, 1, 1], [], []>} : vector<8x128xbf16>, vector<128x32xbf16>, vector<8x32xf32> -> vector<8x32xf32>
    %4 = vector.extract_strided_slice %1 {offsets = [0, 0], sizes = [1, 32], strides = [1, 1]} : vector<6x128xf32> to vector<1x32xf32>
    %5 = vector.broadcast %4 : vector<1x32xf32> to vector<8x32xf32>
    %6 = arith.addf %3, %5 : vector<8x32xf32>
    %7 = arith.truncf %6 : vector<8x32xf32> to vector<8x32xbf16>
    %c0_5 = arith.constant 0 : index
    %c0_6 = arith.constant 0 : index
    %c0_7 = arith.constant 0 : index
    %8 = vector.load %arg3[%c0_5, %c0_6, %c0_7] : memref<4x32x32xbf16, #tpu.memory_space<vmem>>, vector<1x32x32xbf16>
    %9 = vector.shape_cast %8 : vector<1x32x32xbf16> to vector<32x32xbf16>
    %cst_8 = arith.constant dense<0.000000e+00> : vector<8x32xf32>
    %10 = tpu.matmul %7, %9, %cst_8 {dimension_numbers = #tpu.dot_dimension_numbers<[1], [0], [0], [1], [0, 0, 1, 1], [], []>} : vector<8x32xbf16>, vector<32x32xbf16>, vector<8x32xf32> -> vector<8x32xf32>
    %11 = vector.extract_strided_slice %1 {offsets = [1, 0], sizes = [1, 32], strides = [1, 1]} : vector<6x128xf32> to vector<1x32xf32>
    %12 = vector.broadcast %11 : vector<1x32xf32> to vector<8x32xf32>
    %13 = arith.addf %10, %12 : vector<8x32xf32>
    %cst_9 = arith.constant 0.000000e+00 : f32
    %14 = vector.broadcast %cst_9 : f32 to vector<8x32xf32>
    %15 = arith.maximumf %13, %14 : vector<8x32xf32>
    %16 = arith.truncf %15 : vector<8x32xf32> to vector<8x32xbf16>
    %c1 = arith.constant 1 : index
    %c0_10 = arith.constant 0 : index
    %c0_11 = arith.constant 0 : index
    %17 = vector.load %arg3[%c1, %c0_10, %c0_11] : memref<4x32x32xbf16, #tpu.memory_space<vmem>>, vector<1x32x32xbf16>
    %18 = vector.shape_cast %17 : vector<1x32x32xbf16> to vector<32x32xbf16>
    %cst_12 = arith.constant dense<0.000000e+00> : vector<8x32xf32>
    %19 = tpu.matmul %16, %18, %cst_12 {dimension_numbers = #tpu.dot_dimension_numbers<[1], [0], [0], [1], [0, 0, 1, 1], [], []>} : vector<8x32xbf16>, vector<32x32xbf16>, vector<8x32xf32> -> vector<8x32xf32>
    %20 = vector.extract_strided_slice %1 {offsets = [2, 0], sizes = [1, 32], strides = [1, 1]} : vector<6x128xf32> to vector<1x32xf32>
    %21 = vector.broadcast %20 : vector<1x32xf32> to vector<8x32xf32>
    %22 = arith.addf %19, %21 : vector<8x32xf32>
    %cst_13 = arith.constant 0.000000e+00 : f32
    %23 = vector.broadcast %cst_13 : f32 to vector<8x32xf32>
    %24 = arith.maximumf %22, %23 : vector<8x32xf32>
    %25 = arith.truncf %24 : vector<8x32xf32> to vector<8x32xbf16>
    %c2 = arith.constant 2 : index
    %c0_14 = arith.constant 0 : index
    %c0_15 = arith.constant 0 : index
    %26 = vector.load %arg3[%c2, %c0_14, %c0_15] : memref<4x32x32xbf16, #tpu.memory_space<vmem>>, vector<1x32x32xbf16>
    %27 = vector.shape_cast %26 : vector<1x32x32xbf16> to vector<32x32xbf16>
    %cst_16 = arith.constant dense<0.000000e+00> : vector<8x32xf32>
    %28 = tpu.matmul %25, %27, %cst_16 {dimension_numbers = #tpu.dot_dimension_numbers<[1], [0], [0], [1], [0, 0, 1, 1], [], []>} : vector<8x32xbf16>, vector<32x32xbf16>, vector<8x32xf32> -> vector<8x32xf32>
    %29 = vector.extract_strided_slice %1 {offsets = [3, 0], sizes = [1, 32], strides = [1, 1]} : vector<6x128xf32> to vector<1x32xf32>
    %30 = vector.broadcast %29 : vector<1x32xf32> to vector<8x32xf32>
    %31 = arith.addf %28, %30 : vector<8x32xf32>
    %cst_17 = arith.constant 0.000000e+00 : f32
    %32 = vector.broadcast %cst_17 : f32 to vector<8x32xf32>
    %33 = arith.maximumf %31, %32 : vector<8x32xf32>
    %34 = arith.truncf %33 : vector<8x32xf32> to vector<8x32xbf16>
    %c3 = arith.constant 3 : index
    %c0_18 = arith.constant 0 : index
    %c0_19 = arith.constant 0 : index
    %35 = vector.load %arg3[%c3, %c0_18, %c0_19] : memref<4x32x32xbf16, #tpu.memory_space<vmem>>, vector<1x32x32xbf16>
    %36 = vector.shape_cast %35 : vector<1x32x32xbf16> to vector<32x32xbf16>
    %cst_20 = arith.constant dense<0.000000e+00> : vector<8x32xf32>
    %37 = tpu.matmul %34, %36, %cst_20 {dimension_numbers = #tpu.dot_dimension_numbers<[1], [0], [0], [1], [0, 0, 1, 1], [], []>} : vector<8x32xbf16>, vector<32x32xbf16>, vector<8x32xf32> -> vector<8x32xf32>
    %38 = vector.extract_strided_slice %1 {offsets = [4, 0], sizes = [1, 32], strides = [1, 1]} : vector<6x128xf32> to vector<1x32xf32>
    %39 = vector.broadcast %38 : vector<1x32xf32> to vector<8x32xf32>
    %40 = arith.addf %37, %39 : vector<8x32xf32>
    %41 = arith.truncf %40 : vector<8x32xf32> to vector<8x32xbf16>
    %c0_21 = arith.constant 0 : index
    %c0_22 = arith.constant 0 : index
    %42 = vector.load %arg4[%c0_21, %c0_22] : memref<32x128xbf16, #tpu.memory_space<vmem>>, vector<32x128xbf16>
    %cst_23 = arith.constant dense<0.000000e+00> : vector<8x128xf32>
    %43 = tpu.matmul %41, %42, %cst_23 {dimension_numbers = #tpu.dot_dimension_numbers<[1], [0], [0], [1], [0, 0, 1, 1], [], []>} : vector<8x32xbf16>, vector<32x128xbf16>, vector<8x128xf32> -> vector<8x128xf32>
    %44 = vector.extract_strided_slice %1 {offsets = [5, 0], sizes = [1, 128], strides = [1, 1]} : vector<6x128xf32> to vector<1x128xf32>
    %45 = vector.broadcast %44 : vector<1x128xf32> to vector<8x128xf32>
    %46 = arith.addf %43, %45 : vector<8x128xf32>
    %c0_24 = arith.constant 0 : index
    %c0_25 = arith.constant 0 : index
    %47 = vector.load %arg6[%c0_24, %c0_25] : memref<8x128xf32, #tpu.memory_space<vmem>>, vector<8x128xf32>
    tpu.vector_store %arg6[%c0_24, %c0_25], %46 {strides = array<i32>} : memref<8x128xf32, #tpu.memory_space<vmem>>, vector<8x128xf32>,
    return
  }
  func.func @transform_0(%arg0: i32) -> (i32, i32) {
    %c0_i32 = arith.constant 0 : i32
    %c0_i32_0 = arith.constant 0 : i32
    return %arg0, %c0_i32 : i32, i32
  }
  func.func @transform_1(%arg0: i32) -> (i32, i32) {
    %c0_i32 = arith.constant 0 : i32
    %c0_i32_0 = arith.constant 0 : i32
    %c0_i32_1 = arith.constant 0 : i32
    return %c0_i32, %c0_i32_0 : i32, i32
  }
  func.func @transform_2(%arg0: i32) -> (i32, i32, i32) {
    %c0_i32 = arith.constant 0 : i32
    %c0_i32_0 = arith.constant 0 : i32
    %c0_i32_1 = arith.constant 0 : i32
    %c0_i32_2 = arith.constant 0 : i32
    return %c0_i32, %c0_i32_0, %c0_i32_1 : i32, i32, i32
  }
  func.func @transform_3(%arg0: i32) -> (i32, i32) {
    %c0_i32 = arith.constant 0 : i32
    %c0_i32_0 = arith.constant 0 : i32
    %c0_i32_1 = arith.constant 0 : i32
    return %c0_i32, %c0_i32_0 : i32, i32
  }
  func.func @transform_4(%arg0: i32) -> (i32, i32) {
    %c0_i32 = arith.constant 0 : i32
    %c0_i32_0 = arith.constant 0 : i32
    %c0_i32_1 = arith.constant 0 : i32
    return %c0_i32, %c0_i32_0 : i32, i32
  }
  func.func @transform_5(%arg0: i32) -> (i32, i32) {
    %c0_i32 = arith.constant 0 : i32
    %c0_i32_0 = arith.constant 0 : i32
    return %arg0, %c0_i32 : i32, i32
  }
}

</mosaic_0001>

<llo_original>
// kernel: tpu_custom_call.1
$region0: #{tpu_custom_call.1}
  #allocation0 [shape = 'u32[]', space=smem, size = 0x4, offset = 0x4, fixed_abs, tag = 'smem constant byte address 0x4 - core index']
  #allocation1 [shape = 'u32[144,128]{1,0:T(1,128)}', space=vmem, size = 0x12000, scoped, tag = 'internal scratch']
  %s0 = inlined_call_operand.hbm [shape: bf16[8,128], index: 0, kind: input, shape index: {}]
  %s1 = inlined_call_operand.vmem [shape: bf16[128,32], index: 1, kind: input, shape index: {}]
  %s2 = inlined_call_operand.vmem [shape: bf16[4,32,32], index: 2, kind: input, shape index: {}]
  %s3 = inlined_call_operand.vmem [shape: bf16[32,128], index: 3, kind: input, shape index: {}]
  %s4 = inlined_call_operand.vmem [shape: f32[6,128], index: 4, kind: input, shape index: {}]
  %s5 = inlined_call_operand.hbm [shape: f32[8,128], index: 5, kind: output, shape index: {}]
  %s6 = sld [smem:[#allocation0]]
  $region34: #{tpu_custom_call.1} parent=0
    _
  %s8 = ssub.s32 1, %s6
  %s9 = scalar_select 0, %s8, %s6
  $region1: #{tpu_custom_call.1} parent=0
    #allocation2 [shape = 'u8[2048]{0}', space=vmem, size = 0x800, scoped, tag = 'input window, operand 0, single buffered']
    #allocation3 [shape = 's32[1]{0}', space=sflag, size = 0x4, scoped, tag = 'scoped memory for tpu_custom_call.1']
    #allocation4 [shape = 's32[1]{0}', space=sflag, size = 0x4, scoped, tag = 'scoped memory for tpu_custom_call.1']
    #allocation5 [shape = 'u8[4096]{0}', space=vmem, size = 0x1000, scoped, tag = 'output window, operand 0, single buffered']
    %10 = vsyncpa [#allocation3], 0
    %11 = vsyncpa [#allocation4], 0
    // Predicated region
    $region2: #{tpu_custom_call.1} parent=1 // pred_check
      _
    $region3: #{tpu_custom_call.1} parent=1 // pred_check_branch
      %13 = sbr.rel (0) target = $region5
    $region4: #{tpu_custom_call.1} parent=1 // pred_region
      %s15 = ssub.s32 64, 64
      %16 = vsyncadd [#allocation3], %s15
      %s18 = sshll.u32 [#allocation2], 4
      %s19 = int_to_ptr.vmem [resolvable:$true] %s18
      %21 = dma.hbm_to_vmem [thread:$0]  %s0, 64, %s19, [#allocation3]
    $region5: #{tpu_custom_call.1} parent=1 // pred_fallthru
      _
    // Predicated region
    $region6: #{tpu_custom_call.1} parent=1 // pred_check
      _
    $region7: #{tpu_custom_call.1} parent=1 // pred_check_branch
      %23 = sbr.rel (0) target = $region9
    $region8: #{tpu_custom_call.1} parent=1 // pred_region
      _
    $region9: #{tpu_custom_call.1} parent=1 // pred_fallthru
      _
    // Predicated region
    $region10: #{tpu_custom_call.1} parent=1 // pred_check
      _
    $region11: #{tpu_custom_call.1} parent=1 // pred_check_branch
      %25 = sbr.rel (0) target = $region13
    $region12: #{tpu_custom_call.1} parent=1 // pred_region
      _
    $region13: #{tpu_custom_call.1} parent=1 // pred_fallthru
      _
    // Predicated region
    $region14: #{tpu_custom_call.1} parent=1 // pred_check
      _
    $region15: #{tpu_custom_call.1} parent=1 // pred_check_branch
      %27 = sbr.rel (0) target = $region17
    $region16: #{tpu_custom_call.1} parent=1 // pred_region
      _
    $region17: #{tpu_custom_call.1} parent=1 // pred_fallthru
      _
    // Predicated region
    $region18: #{tpu_custom_call.1} parent=1 // pred_check
      _
    $region19: #{tpu_custom_call.1} parent=1 // pred_check_branch
      %29 = sbr.rel (0) target = $region21
    $region20: #{tpu_custom_call.1} parent=1 // pred_region
      _
    $region21: #{tpu_custom_call.1} parent=1 // pred_fallthru
      _
    // Predicated region
    $region22: #{tpu_custom_call.1} parent=1 // pred_check
      _
    $region23: #{tpu_custom_call.1} parent=1 // pred_check_branch
      %31 = sbr.rel (0) target = $region25
    $region24: #{tpu_custom_call.1} parent=1 // pred_region
      %32 = dma.done [#allocation3], 64
    $region25: #{tpu_custom_call.1} parent=1 // pred_fallthru
      _
    %v34 = vld [vmem:[#allocation2] sm:$0xf]
    %v35 = vld [vmem:[%s4] sm:$0x3f]
    %v36 = vld [vmem:[%s1] sm:$0xf]
    %v37 = vld [vmem:[%s1 + $0x4] sm:$0xf]
    %v38 = vld [vmem:[%s1 + $0x8] sm:$0xf]
    %v39 = vld [vmem:[%s1 + $0xc] sm:$0xf]
    %v40 = vld [vmem:[%s1 + $0x10] sm:$0xf]
    %v41 = vld [vmem:[%s1 + $0x14] sm:$0xf]
    %v42 = vld [vmem:[%s1 + $0x18] sm:$0xf]
    %v43 = vld [vmem:[%s1 + $0x1c] sm:$0xf]
    %v44 = vld [vmem:[%s1 + $0x20] sm:$0xf]
    %v45 = vld [vmem:[%s1 + $0x24] sm:$0xf]
    %v46 = vld [vmem:[%s1 + $0x28] sm:$0xf]
    %v47 = vld [vmem:[%s1 + $0x2c] sm:$0xf]
    %v48 = vld [vmem:[%s1 + $0x30] sm:$0xf]
    %v49 = vld [vmem:[%s1 + $0x34] sm:$0xf]
    %v50 = vld [vmem:[%s1 + $0x38] sm:$0xf]
    %v51 = vld [vmem:[%s1 + $0x3c] sm:$0xf]
    %v52 = vlaneseq
    %v53 = vshrl.u32 %v52, 7
    %v54 = vsub.s32 0, %v53
    %v55 = vrot.slane %v35, %v54
    %v72 = vunpack.c.l.b16 %v36
    %v73 = vunpack.c.l.b16 %v37
    %v74 = vunpack.c.l.b16 %v38
    %v75 = vunpack.c.l.b16 %v39
    %v76 = vunpack.c.l.b16 %v40
    %v77 = vunpack.c.l.b16 %v41
    %v78 = vunpack.c.l.b16 %v42
    %v79 = vunpack.c.l.b16 %v43
    %v80 = vunpack.c.l.b16 %v44
    %v81 = vunpack.c.l.b16 %v45
    %v82 = vunpack.c.l.b16 %v46
    %v83 = vunpack.c.l.b16 %v47
    %v84 = vunpack.c.l.b16 %v48
    %v85 = vunpack.c.l.b16 %v49
    %v86 = vunpack.c.l.b16 %v50
    %v87 = vunpack.c.l.b16 %v51
    %v88 = vpack.c.b16 %v73, %v72
    %v89 = vpack.c.b16 %v75, %v74
    %v90 = vpack.c.b16 %v77, %v76
    %v91 = vpack.c.b16 %v79, %v78
    %v92 = vpack.c.b16 %v81, %v80
    %v93 = vpack.c.b16 %v83, %v82
    %v94 = vpack.c.b16 %v85, %v84
    %v95 = vpack.c.b16 %v87, %v86
    %104 = vmatprep.subr.bf16.mxu0 0
    %105 = vmatpush1.bf16.msra.mxu0 %v88
    %106 = vmatprep.subr.bf16.mxu0 0
    %107 = vmatpush1.bf16.msra.mxu0 %v89
    %108 = vmatprep.subr.bf16.mxu0 0
    %109 = vmatpush1.bf16.msra.mxu0 %v90
    %110 = vmatprep.subr.bf16.mxu0 0
    %111 = vmatpush1.bf16.msra.mxu0 %v91
    %112 = vmatprep.subr.bf16.mxu0 0
    %113 = vmatpush1.bf16.msra.mxu0 %v92
    %114 = vmatprep.subr.bf16.mxu0 0
    %115 = vmatpush1.bf16.msra.mxu0 %v93
    %116 = vmatprep.subr.bf16.mxu0 0
    %117 = vmatpush1.bf16.msra.mxu0 %v94
    %118 = vmatprep.subr.bf16.mxu0 0
    %119 = vmatpush1.bf16.msra.mxu0 %v95
    %120 = vmatprep.subr.bf16.mxu0 0
    %121 = vmatpush1.bf16.msra.mxu0 0
    %122 = vmatprep.subr.bf16.mxu0 0
    %123 = vmatpush1.bf16.msra.mxu0 0
    %124 = vmatprep.subr.bf16.mxu0 0
    %125 = vmatpush1.bf16.msra.mxu0 0
    %126 = vmatprep.subr.bf16.mxu0 0
    %127 = vmatpush1.bf16.msra.mxu0 0
    %128 = vmatprep.subr.bf16.mxu0 0
    %129 = vmatpush1.bf16.msra.mxu0 0
    %130 = vmatprep.subr.bf16.mxu0 0
    %131 = vmatpush1.bf16.msra.mxu0 0
    %132 = vmatprep.subr.bf16.mxu0 0
    %133 = vmatpush1.bf16.msra.mxu0 0
    %134 = vmatprep.subr.bf16.mxu0 0
    %135 = vmatpush1.bf16.msra.mxu0 0
    %136 = vmatprep.mubr.bf16.mxu0 0
    %137 = vmatmul.mubr.bf16.gmra.mrb[0].mxu0 %v34
    %v138 = vpop.f32.mrb[0].mxu0
    %v139 = vadd.f32 %v55, %v138
    %v140 = vpop.f32.mrb[0].mxu0
    %v141 = vpop.f32.mrb[0].mxu0
    %v142 = vpop.f32.mrb[0].mxu0
    %143 = vdwg.mxu0
    %v144 = vpack.c.bf16 %v139, %v139
    %v145 = vld [vmem:[%s2] sm:$0xf]
    %v146 = vld [vmem:[%s2 + $0x4] sm:$0xf]
    %v147 = vld [vmem:[%s2 + $0x8] sm:$0xf]
    %v148 = vld [vmem:[%s2 + $0xc] sm:$0xf]
    %v149 = vlaneseq
    %v150 = vshrl.u32 %v149, 7
    %v151 = vsub.s32 1, %v150
    %v152 = vrot.slane %v35, %v151
    %v157 = vunpack.c.l.b16 %v145
    %v158 = vunpack.c.l.b16 %v146
    %v159 = vunpack.c.l.b16 %v147
    %v160 = vunpack.c.l.b16 %v148
    %v161 = vpack.c.b16 %v158, %v157
    %v162 = vpack.c.b16 %v160, %v159
    %vm165 = vcmask 261120
    %v167 = vsel %vm165, %v144, 0
    %169 = vmatprep.subr.bf16.mxu0 0
    %170 = vmatpush1.bf16.msra.mxu0 %v161
    %171 = vmatprep.subr.bf16.mxu0 0
    %172 = vmatpush1.bf16.msra.mxu0 %v162
    %173 = vmatprep.subr.bf16.mxu0 0
    %174 = vmatpush1.bf16.msra.mxu0 0
    %175 = vmatprep.subr.bf16.mxu0 0
    %176 = vmatpush1.bf16.msra.mxu0 0
    %177 = vmatprep.subr.bf16.mxu0 0
    %178 = vmatpush1.bf16.msra.mxu0 0
    %179 = vmatprep.subr.bf16.mxu0 0
    %180 = vmatpush1.bf16.msra.mxu0 0
    %181 = vmatprep.subr.bf16.mxu0 0
    %182 = vmatpush1.bf16.msra.mxu0 0
    %183 = vmatprep.subr.bf16.mxu0 0
    %184 = vmatpush1.bf16.msra.mxu0 0
    %185 = vmatprep.subr.bf16.mxu0 0
    %186 = vmatpush1.bf16.msra.mxu0 0
    %187 = vmatprep.subr.bf16.mxu0 0
    %188 = vmatpush1.bf16.msra.mxu0 0
    %189 = vmatprep.subr.bf16.mxu0 0
    %190 = vmatpush1.bf16.msra.mxu0 0
    %191 = vmatprep.subr.bf16.mxu0 0
    %192 = vmatpush1.bf16.msra.mxu0 0
    %193 = vmatprep.subr.bf16.mxu0 0
    %194 = vmatpush1.bf16.msra.mxu0 0
    %195 = vmatprep.subr.bf16.mxu0 0
    %196 = vmatpush1.bf16.msra.mxu0 0
    %197 = vmatprep.subr.bf16.mxu0 0
    %198 = vmatpush1.bf16.msra.mxu0 0
    %199 = vmatprep.subr.bf16.mxu0 0
    %200 = vmatpush1.bf16.msra.mxu0 0
    %201 = vmatprep.mubr.bf16.mxu0 0
    %202 = vmatmul.mubr.bf16.gmra.mrb[0].mxu0 %v167
    %v203 = vpop.f32.mrb[0].mxu0
    %v204 = vadd.f32 %v152, %v203
    %v205 = vpop.f32.mrb[0].mxu0
    %v206 = vpop.f32.mrb[0].mxu0
    %v207 = vpop.f32.mrb[0].mxu0
    %208 = vdwg.mxu0
    %v209 = vmax.f32 %v204, 0.0
    %v210 = vpack.c.bf16 %v209, %v209
    %s211 = scalar_lea.vmem %s2, 16
    %v212 = vld [vmem:[%s211] sm:$0xf]
    %v213 = vld [vmem:[%s211 + $0x4] sm:$0xf]
    %v214 = vld [vmem:[%s211 + $0x8] sm:$0xf]
    %v215 = vld [vmem:[%s211 + $0xc] sm:$0xf]
    %v216 = vlaneseq
    %v217 = vshrl.u32 %v216, 7
    %v218 = vsub.s32 2, %v217
    %v219 = vrot.slane %v35, %v218
    %v224 = vunpack.c.l.b16 %v212
    %v225 = vunpack.c.l.b16 %v213
    %v226 = vunpack.c.l.b16 %v214
    %v227 = vunpack.c.l.b16 %v215
    %v228 = vpack.c.b16 %v225, %v224
    %v229 = vpack.c.b16 %v227, %v226
    %v233 = vsel %vm165, %v210, 0
    %235 = vmatprep.subr.bf16.mxu0 0
    %236 = vmatpush1.bf16.msra.mxu0 %v228
    %237 = vmatprep.subr.bf16.mxu0 0
    %238 = vmatpush1.bf16.msra.mxu0 %v229
    %239 = vmatprep.subr.bf16.mxu0 0
    %240 = vmatpush1.bf16.msra.mxu0 0
    %241 = vmatprep.subr.bf16.mxu0 0
    %242 = vmatpush1.bf16.msra.mxu0 0
    %243 = vmatprep.subr.bf16.mxu0 0
    %244 = vmatpush1.bf16.msra.mxu0 0
    %245 = vmatprep.subr.bf16.mxu0 0
    %246 = vmatpush1.bf16.msra.mxu0 0
    %247 = vmatprep.subr.bf16.mxu0 0
    %248 = vmatpush1.bf16.msra.mxu0 0
    %249 = vmatprep.subr.bf16.mxu0 0
    %250 = vmatpush1.bf16.msra.mxu0 0
    %251 = vmatprep.subr.bf16.mxu0 0
    %252 = vmatpush1.bf16.msra.mxu0 0
    %253 = vmatprep.subr.bf16.mxu0 0
    %254 = vmatpush1.bf16.msra.mxu0 0
    %255 = vmatprep.subr.bf16.mxu0 0
    %256 = vmatpush1.bf16.msra.mxu0 0
    %257 = vmatprep.subr.bf16.mxu0 0
    %258 = vmatpush1.bf16.msra.mxu0 0
    %259 = vmatprep.subr.bf16.mxu0 0
    %260 = vmatpush1.bf16.msra.mxu0 0
    %261 = vmatprep.subr.bf16.mxu0 0
    %262 = vmatpush1.bf16.msra.mxu0 0
    %263 = vmatprep.subr.bf16.mxu0 0
    %264 = vmatpush1.bf16.msra.mxu0 0
    %265 = vmatprep.subr.bf16.mxu0 0
    %266 = vmatpush1.bf16.msra.mxu0 0
    %267 = vmatprep.mubr.bf16.mxu0 0
    %268 = vmatmul.mubr.bf16.gmra.mrb[0].mxu0 %v233
    %v269 = vpop.f32.mrb[0].mxu0
    %v270 = vadd.f32 %v219, %v269
    %v271 = vpop.f32.mrb[0].mxu0
    %v272 = vpop.f32.mrb[0].mxu0
    %v273 = vpop.f32.mrb[0].mxu0
    %274 = vdwg.mxu0
    %v275 = vmax.f32 %v270, 0.0
    %v276 = vpack.c.bf16 %v275, %v275
    %s277 = scalar_lea.vmem %s2, 32
    %v278 = vld [vmem:[%s277] sm:$0xf]
    %v279 = vld [vmem:[%s277 + $0x4] sm:$0xf]
    %v280 = vld [vmem:[%s277 + $0x8] sm:$0xf]
    %v281 = vld [vmem:[%s277 + $0xc] sm:$0xf]
    %v282 = vlaneseq
    %v283 = vshrl.u32 %v282, 7
    %v284 = vsub.s32 3, %v283
    %v285 = vrot.slane %v35, %v284
    %v290 = vunpack.c.l.b16 %v278
    %v291 = vunpack.c.l.b16 %v279
    %v292 = vunpack.c.l.b16 %v280
    %v293 = vunpack.c.l.b16 %v281
    %v294 = vpack.c.b16 %v291, %v290
    %v295 = vpack.c.b16 %v293, %v292
    %v299 = vsel %vm165, %v276, 0
    %301 = vmatprep.subr.bf16.mxu0 0
    %302 = vmatpush1.bf16.msra.mxu0 %v294
    %303 = vmatprep.subr.bf16.mxu0 0
    %304 = vmatpush1.bf16.msra.mxu0 %v295
    %305 = vmatprep.subr.bf16.mxu0 0
    %306 = vmatpush1.bf16.msra.mxu0 0
    %307 = vmatprep.subr.bf16.mxu0 0
    %308 = vmatpush1.bf16.msra.mxu0 0
    %309 = vmatprep.subr.bf16.mxu0 0
    %310 = vmatpush1.bf16.msra.mxu0 0
    %311 = vmatprep.subr.bf16.mxu0 0
    %312 = vmatpush1.bf16.msra.mxu0 0
    %313 = vmatprep.subr.bf16.mxu0 0
    %314 = vmatpush1.bf16.msra.mxu0 0
    %315 = vmatprep.subr.bf16.mxu0 0
    %316 = vmatpush1.bf16.msra.mxu0 0
    %317 = vmatprep.subr.bf16.mxu0 0
    %318 = vmatpush1.bf16.msra.mxu0 0
    %319 = vmatprep.subr.bf16.mxu0 0
    %320 = vmatpush1.bf16.msra.mxu0 0
    %321 = vmatprep.subr.bf16.mxu0 0
    %322 = vmatpush1.bf16.msra.mxu0 0
    %323 = vmatprep.subr.bf16.mxu0 0
    %324 = vmatpush1.bf16.msra.mxu0 0
    %325 = vmatprep.subr.bf16.mxu0 0
    %326 = vmatpush1.bf16.msra.mxu0 0
    %327 = vmatprep.subr.bf16.mxu0 0
    %328 = vmatpush1.bf16.msra.mxu0 0
    %329 = vmatprep.subr.bf16.mxu0 0
    %330 = vmatpush1.bf16.msra.mxu0 0
    %331 = vmatprep.subr.bf16.mxu0 0
    %332 = vmatpush1.bf16.msra.mxu0 0
    %333 = vmatprep.mubr.bf16.mxu0 0
    %334 = vmatmul.mubr.bf16.gmra.mrb[0].mxu0 %v299
    %v335 = vpop.f32.mrb[0].mxu0
    %v336 = vadd.f32 %v285, %v335
    %v337 = vpop.f32.mrb[0].mxu0
    %v338 = vpop.f32.mrb[0].mxu0
    %v339 = vpop.f32.mrb[0].mxu0
    %340 = vdwg.mxu0
    %v341 = vmax.f32 %v336, 0.0
    %v342 = vpack.c.bf16 %v341, %v341
    %s343 = scalar_lea.vmem %s2, 48
    %v344 = vld [vmem:[%s343] sm:$0xf]
    %v345 = vld [vmem:[%s343 + $0x4] sm:$0xf]
    %v346 = vld [vmem:[%s343 + $0x8] sm:$0xf]
    %v347 = vld [vmem:[%s343 + $0xc] sm:$0xf]
    %v348 = vlaneseq
    %v349 = vshrl.u32 %v348, 7
    %v350 = vsub.s32 4, %v349
    %v351 = vrot.slane %v35, %v350
    %v356 = vunpack.c.l.b16 %v344
    %v357 = vunpack.c.l.b16 %v345
    %v358 = vunpack.c.l.b16 %v346
    %v359 = vunpack.c.l.b16 %v347
    %v360 = vpack.c.b16 %v357, %v356
    %v361 = vpack.c.b16 %v359, %v358
    %v365 = vsel %vm165, %v342, 0
    %367 = vmatprep.subr.bf16.mxu0 0
    %368 = vmatpush1.bf16.msra.mxu0 %v360
    %369 = vmatprep.subr.bf16.mxu0 0
    %370 = vmatpush1.bf16.msra.mxu0 %v361
    %371 = vmatprep.subr.bf16.mxu0 0
    %372 = vmatpush1.bf16.msra.mxu0 0
    %373 = vmatprep.subr.bf16.mxu0 0
    %374 = vmatpush1.bf16.msra.mxu0 0
    %375 = vmatprep.subr.bf16.mxu0 0
    %376 = vmatpush1.bf16.msra.mxu0 0
    %377 = vmatprep.subr.bf16.mxu0 0
    %378 = vmatpush1.bf16.msra.mxu0 0
    %379 = vmatprep.subr.bf16.mxu0 0
    %380 = vmatpush1.bf16.msra.mxu0 0
    %381 = vmatprep.subr.bf16.mxu0 0
    %382 = vmatpush1.bf16.msra.mxu0 0
    %383 = vmatprep.subr.bf16.mxu0 0
    %384 = vmatpush1.bf16.msra.mxu0 0
    %385 = vmatprep.subr.bf16.mxu0 0
    %386 = vmatpush1.bf16.msra.mxu0 0
    %387 = vmatprep.subr.bf16.mxu0 0
    %388 = vmatpush1.bf16.msra.mxu0 0
    %389 = vmatprep.subr.bf16.mxu0 0
    %390 = vmatpush1.bf16.msra.mxu0 0
    %391 = vmatprep.subr.bf16.mxu0 0
    %392 = vmatpush1.bf16.msra.mxu0 0
    %393 = vmatprep.subr.bf16.mxu0 0
    %394 = vmatpush1.bf16.msra.mxu0 0
    %395 = vmatprep.subr.bf16.mxu0 0
    %396 = vmatpush1.bf16.msra.mxu0 0
    %397 = vmatprep.subr.bf16.mxu0 0
    %398 = vmatpush1.bf16.msra.mxu0 0
    %399 = vmatprep.mubr.bf16.mxu0 0
    %400 = vmatmul.mubr.bf16.gmra.mrb[0].mxu0 %v365
    %v401 = vpop.f32.mrb[0].mxu0
    %v402 = vadd.f32 %v351, %v401
    %v403 = vpop.f32.mrb[0].mxu0
    %v404 = vpop.f32.mrb[0].mxu0
    %v405 = vpop.f32.mrb[0].mxu0
    %406 = vdwg.mxu0
    %v407 = vpack.c.bf16 %v402, %v402
    %v408 = vld [vmem:[%s3] sm:$0xf]
    %v409 = vld [vmem:[%s3 + $0x4] sm:$0xf]
    %v410 = vld [vmem:[%s3 + $0x8] sm:$0xf]
    %v411 = vld [vmem:[%s3 + $0xc] sm:$0xf]
    %v412 = vlaneseq
    %v413 = vshrl.u32 %v412, 7
    %v414 = vsub.s32 5, %v413
    %v415 = vrot.slane %v35, %v414
    %v420 = vunpack.c.l.b16 %v408
    %v421 = vunpack.c.l.b16 %v409
    %v422 = vunpack.c.l.b16 %v410
    %v423 = vunpack.c.l.b16 %v411
    %v424 = vpack.c.b16 %v421, %v420
    %v425 = vpack.c.b16 %v423, %v422
    %v429 = vsel %vm165, %v407, 0
    %431 = vmatprep.subr.bf16.mxu0 0
    %432 = vmatpush1.bf16.msra.mxu0 %v424
    %433 = vmatprep.subr.bf16.mxu0 0
    %434 = vmatpush1.bf16.msra.mxu0 %v425
    %435 = vmatprep.subr.bf16.mxu0 0
    %436 = vmatpush1.bf16.msra.mxu0 0
    %437 = vmatprep.subr.bf16.mxu0 0
    %438 = vmatpush1.bf16.msra.mxu0 0
    %439 = vmatprep.subr.bf16.mxu0 0
    %440 = vmatpush1.bf16.msra.mxu0 0
    %441 = vmatprep.subr.bf16.mxu0 0
    %442 = vmatpush1.bf16.msra.mxu0 0
    %443 = vmatprep.subr.bf16.mxu0 0
    %444 = vmatpush1.bf16.msra.mxu0 0
    %445 = vmatprep.subr.bf16.mxu0 0
    %446 = vmatpush1.bf16.msra.mxu0 0
    %447 = vmatprep.subr.bf16.mxu0 0
    %448 = vmatpush1.bf16.msra.mxu0 0
    %449 = vmatprep.subr.bf16.mxu0 0
    %450 = vmatpush1.bf16.msra.mxu0 0
    %451 = vmatprep.subr.bf16.mxu0 0
    %452 = vmatpush1.bf16.msra.mxu0 0
    %453 = vmatprep.subr.bf16.mxu0 0
    %454 = vmatpush1.bf16.msra.mxu0 0
    %455 = vmatprep.subr.bf16.mxu0 0
    %456 = vmatpush1.bf16.msra.mxu0 0
    %457 = vmatprep.subr.bf16.mxu0 0
    %458 = vmatpush1.bf16.msra.mxu0 0
    %459 = vmatprep.subr.bf16.mxu0 0
    %460 = vmatpush1.bf16.msra.mxu0 0
    %461 = vmatprep.subr.bf16.mxu0 0
    %462 = vmatpush1.bf16.msra.mxu0 0
    %463 = vmatprep.mubr.bf16.mxu0 0
    %464 = vmatmul.mubr.bf16.gmra.mrb[0].mxu0 %v429
    %v465 = vpop.f32.mrb[0].mxu0
    %v466 = vadd.f32 %v415, %v465
    %v467 = vpop.f32.mrb[0].mxu0
    %v468 = vpop.f32.mrb[0].mxu0
    %v469 = vpop.f32.mrb[0].mxu0
    %470 = vdwg.mxu0
    %471 = vst [vmem:[#allocation5] sm:$0xff] %v466
    // Predicated region
    $region26: #{tpu_custom_call.1} parent=1 // pred_check
      _
    $region27: #{tpu_custom_call.1} parent=1 // pred_check_branch
      %473 = sbr.rel (0) target = $region29
    $region28: #{tpu_custom_call.1} parent=1 // pred_region
      %s475 = ssub.s32 128, 128
      %476 = vsyncadd [#allocation4], %s475
      %s478 = sshll.u32 [#allocation5], 4
      %s479 = int_to_ptr.vmem [resolvable:$true] %s478
      %481 = dma.vmem_to_hbm [thread:$0]  %s479, 128, %s5, [#allocation4]
    $region29: #{tpu_custom_call.1} parent=1 // pred_fallthru
      _
    // Predicated region
    $region30: #{tpu_custom_call.1} parent=1 // pred_check
      _
    $region31: #{tpu_custom_call.1} parent=1 // pred_check_branch
      %483 = sbr.rel (0) target = $region33
    $region32: #{tpu_custom_call.1} parent=1 // pred_region
      %484 = dma.done [#allocation4], 128
    $region33: #{tpu_custom_call.1} parent=1 // pred_fallthru
      _
    %485 = vsyncpa [#allocation3], 1
    %486 = vsyncpa [#allocation4], 1

</llo_original>
